<compile_context>
chip_gen: v7x
topology: tpu7x:2x2x1
jax: 0.10.0
libtpu: 0.0.40
codegen_flags: <defaults>
</compile_context>

<pallas_src>
import math

import jax
import jax.numpy as jnp
from jax.experimental import pallas as pl
from jax.experimental.pallas import tpu as pltpu

_LANE = 128
_SUBLANE = 8


# -----------------------------------------------------------------------------
# Pallas kernel: out = (data - mean) * inv   (inv = 1 / (norm * scale))
# mean/inv are [1, td] rows broadcast over the sublane (row) axis of the tile.
# -----------------------------------------------------------------------------
def _mean_norm_kernel(data_ref, mean_ref, inv_ref, out_ref):
    out_ref[...] = (data_ref[...] - mean_ref[...]) * inv_ref[...]


def _choose_tiles(rows, width, itemsize):
    """Pick (TB, TD) so the double-buffered in+out working set fits ~24 MiB
    (safe on v7x's 64 MiB VMEM; generous on v5e/v6e's 128 MiB)."""
    budget_bytes = 24 * 1024 * 1024
    # 2 buffers x (in tile + out tile) = 4 * TB * TD * itemsize bytes.
    max_tile_elems = budget_bytes // (4 * itemsize)

    # Feature tile: full width when modest, else a 1024-lane slice (mult of 128).
    td = width if width <= 4096 else 8 * _LANE

    # Batch tile: as many rows as fit the budget, multiple of 8, capped at 1024
    # (measured streaming kernels sit at ~85% of HBM roofline at 512-1024 rows).
    tb = max(_SUBLANE, ((max_tile_elems // td) // _SUBLANE) * _SUBLANE)
    tb = min(tb, 1024)
    if tb >= rows:
        tb = rows  # full extent -> always a legal block shape
    return tb, td


def _mean_norm_2d(x, mean_row, inv_row):
    """x: [rows, width]; mean_row/inv_row: [1, width]. width is a mult of 128."""
    rows, width = x.shape
    tb, td = _choose_tiles(rows, width, jnp.dtype(x.dtype).itemsize)
    grid = (pl.cdiv(rows, tb), pl.cdiv(width, td))

    return pl.pallas_call(
        _mean_norm_kernel,
        out_shape=jax.ShapeDtypeStruct((rows, width), x.dtype),
        grid=grid,
        in_specs=[
            pl.BlockSpec((tb, td), lambda i, j: (i, j)),   # data tile
            pl.BlockSpec((1, td), lambda i, j: (0, j)),    # mean row
            pl.BlockSpec((1, td), lambda i, j: (0, j)),    # 1/(norm*scale) row
        ],
        out_specs=pl.BlockSpec((tb, td), lambda i, j: (i, j)),
        compiler_params=pltpu.CompilerParams(
            dimension_semantics=("parallel", "parallel"),
            vmem_limit_bytes=32 * 1024 * 1024,
        ),
    )(x, mean_row, inv_row)


def mean_norm_normalize(data, mean, norm, *, scale=1.0):
    """Pallas implementation of MeanNormNormalize.forward.

    data: [batch, D]; mean: [D]; norm: [D]; scale: python float or traced scalar.
    """
    batch, dim = data.shape

    # Fold scale into an exact wrapper-side reciprocal: kernel does a VPU multiply
    # instead of a per-element EUP divide, and `scale` may be a traced value.
    inv = (1.0 / (norm.astype(jnp.float32) * scale)).astype(data.dtype)
    mean = mean.astype(data.dtype)

    if dim % _LANE != 0:
        # Lane-dense repack: pack R = lcm(D,128)/D consecutive rows into one
        # packed row of width W = lcm(D,128) so every vreg lane carries data and
        # stores are unmasked. Pure layout plumbing; same HBM traffic.
        w = (dim * _LANE) // math.gcd(dim, _LANE)
        rows_per_packed = w // dim
        padded_batch = ((batch + rows_per_packed - 1) // rows_per_packed) * rows_per_packed
        x = data
        if padded_batch != batch:
            x = jnp.pad(x, ((0, padded_batch - batch), (0, 0)))
        packed = x.reshape(padded_batch // rows_per_packed, w)
        mean_row = jnp.tile(mean, rows_per_packed).reshape(1, w)
        inv_row = jnp.tile(inv, rows_per_packed).reshape(1, w)
        out = _mean_norm_2d(packed, mean_row, inv_row)
        out = out.reshape(padded_batch, dim)
        if padded_batch != batch:
            out = out[:batch]
        return out

    # D already a multiple of 128: use the natural [batch, D] layout.
    return _mean_norm_2d(data, mean.reshape(1, dim), inv.reshape(1, dim))


# -----------------------------------------------------------------------------
# Glue: MeanNormNormalize.compute_statistics in plain JAX (deterministic buffer
# init; irreps given as (mul, l) tuples, ir.dim == 2*l + 1, scalar <=> l == 0).
# -----------------------------------------------------------------------------
def compute_statistics(data, irreps, *, normalization="component",
                       reduce="mean", eps=1e-5):
    all_mean, all_norm = [], []
    ix = 0
    for mul, l in irreps:
        d = 2 * l + 1
        field = data[:, ix:ix + mul * d]
        ix += mul * d
        field = field.reshape(-1, mul, d)

        if l == 0:  # scalar irrep: subtract mean
            field_mean = field.mean(axis=0).reshape(mul)
            field = field - field_mean.reshape(-1, mul, 1)
        else:
            field_mean = jnp.zeros((mul,), dtype=data.dtype)
        all_mean.append(jnp.repeat(field_mean, d))

        if normalization == "norm":
            field_norm = (field ** 2).sum(axis=-1)
        elif normalization == "component":
            field_norm = (field ** 2).mean(axis=-1)
        else:
            raise ValueError(normalization)

        if reduce == "mean":
            field_norm = field_norm.mean(axis=0)
        elif reduce == "max":
            field_norm = field_norm.max(axis=0)
        else:
            raise ValueError(reduce)

        field_norm = jnp.sqrt(field_norm + eps)
        all_norm.append(jnp.repeat(field_norm, d))

    assert ix == data.shape[-1]
    return jnp.concatenate(all_mean), jnp.concatenate(all_norm)


# -----------------------------------------------------------------------------
# Reference (pure JAX) for correctness check.
# -----------------------------------------------------------------------------
def mean_norm_normalize_ref(data, mean, norm, *, scale=1.0):
    return (data - mean) / (norm * scale)


if __name__ == "__main__":
    key = jax.random.PRNGKey(0)

    # --- Case 1: irreps "4x0e + 2x1o" -> D = 4*1 + 2*3 = 10 (lane-repack path) ---
    irreps = [(4, 0), (2, 1)]
    batch, dim = 8, 10
    k1, k2, k3 = jax.random.split(key, 3)
    data = jax.random.normal(k1, (batch, dim), dtype=jnp.float32)
    mean, norm = compute_statistics(data, irreps)

    out = jax.block_until_ready(mean_norm_normalize(data, mean, norm, scale=1.0))
    ref = mean_norm_normalize_ref(data, mean, norm, scale=1.0)
    assert out.shape == (batch, dim) and out.dtype == jnp.float32
    assert jnp.allclose(out, ref, atol=1e-5, rtol=1e-5)

    # --- Case 2: same irreps, bigger batch, scale != 1 (repack + padding path) ---
    batch2 = 192
    data2 = jax.random.normal(k2, (batch2, dim), dtype=jnp.float32)
    mean2, norm2 = compute_statistics(data2, irreps)
    out2 = jax.block_until_ready(mean_norm_normalize(data2, mean2, norm2, scale=0.5))
    ref2 = mean_norm_normalize_ref(data2, mean2, norm2, scale=0.5)
    assert out2.shape == (batch2, dim)
    assert jnp.allclose(out2, ref2, atol=1e-5, rtol=1e-5)

    # --- Case 3: D a multiple of 128 (natural-layout path) ---
    batch3, dim3 = 64, 256
    data3 = jax.random.normal(k3, (batch3, dim3), dtype=jnp.float32)
    mean3 = jnp.sin(jnp.arange(dim3, dtype=jnp.float32))
    norm3 = 0.5 + jnp.abs(jnp.cos(jnp.arange(dim3, dtype=jnp.float32)))
    out3 = jax.block_until_ready(mean_norm_normalize(data3, mean3, norm3, scale=2.0))
    ref3 = mean_norm_normalize_ref(data3, mean3, norm3, scale=2.0)
    assert out3.shape == (batch3, dim3)
    assert jnp.allclose(out3, ref3, atol=1e-5, rtol=1e-5)

    print("KERNEL_OK")
</pallas_src>

<mosaic_0001>
module attributes {stable_mosaic.version = 11 : i64} {
  func.func @_mean_norm_kernel(%arg0: i32, %arg1: i32, %arg2: memref<1x640xf32, #tpu.memory_space<vmem>>, %arg3: memref<1x640xf32, #tpu.memory_space<vmem>>, %arg4: memref<1x640xf32, #tpu.memory_space<vmem>>, %arg5: memref<1x640xf32, #tpu.memory_space<vmem>>) attributes {dimension_semantics = [#tpu.dimension_semantics<parallel>, #tpu.dimension_semantics<parallel>], iteration_bounds = array<i64: 1, 1>, scalar_prefetch = 0 : i64, scratch_operands = 0 : i64, tpu.core_type = #tpu.core_type<tc>, window_params = [{transform_indices = @transform_0, window_bounds = array<i64: 1, 640>}, {transform_indices = @transform_1, window_bounds = array<i64: 1, 640>}, {transform_indices = @transform_2, window_bounds = array<i64: 1, 640>}, {transform_indices = @transform_3, window_bounds = array<i64: 1, 640>}]} {
    %c0 = arith.constant 0 : index
    %c0_0 = arith.constant 0 : index
    %0 = vector.load %arg2[%c0, %c0_0] : memref<1x640xf32, #tpu.memory_space<vmem>>, vector<1x640xf32>
    %c0_1 = arith.constant 0 : index
    %c0_2 = arith.constant 0 : index
    %1 = vector.load %arg3[%c0_1, %c0_2] : memref<1x640xf32, #tpu.memory_space<vmem>>, vector<1x640xf32>
    %2 = arith.subf %0, %1 : vector<1x640xf32>
    %c0_3 = arith.constant 0 : index
    %c0_4 = arith.constant 0 : index
    %3 = vector.load %arg4[%c0_3, %c0_4] : memref<1x640xf32, #tpu.memory_space<vmem>>, vector<1x640xf32>
    %4 = arith.mulf %2, %3 : vector<1x640xf32>
    %c0_5 = arith.constant 0 : index
    %c0_6 = arith.constant 0 : index
    %5 = vector.load %arg5[%c0_5, %c0_6] : memref<1x640xf32, #tpu.memory_space<vmem>>, vector<1x640xf32>
    tpu.vector_store %arg5[%c0_5, %c0_6], %4 {strides = array<i32>} : memref<1x640xf32, #tpu.memory_space<vmem>>, vector<1x640xf32>,
    return
  }
  func.func @transform_0(%arg0: i32, %arg1: i32) -> (i32, i32) {
    %c0_i32 = arith.constant 0 : i32
    return %arg0, %arg1 : i32, i32
  }
  func.func @transform_1(%arg0: i32, %arg1: i32) -> (i32, i32) {
    %c0_i32 = arith.constant 0 : i32
    %c0_i32_0 = arith.constant 0 : i32
    return %c0_i32, %arg1 : i32, i32
  }
  func.func @transform_2(%arg0: i32, %arg1: i32) -> (i32, i32) {
    %c0_i32 = arith.constant 0 : i32
    %c0_i32_0 = arith.constant 0 : i32
    return %c0_i32, %arg1 : i32, i32
  }
  func.func @transform_3(%arg0: i32, %arg1: i32) -> (i32, i32) {
    %c0_i32 = arith.constant 0 : i32
    return %arg0, %arg1 : i32, i32
  }
}

</mosaic_0001>

<llo_original>
// kernel: tpu_custom_call.1
$region0: #{tpu_custom_call.1}
  #allocation0 [shape = 'u32[]', space=smem, size = 0x4, offset = 0x4, fixed_abs, tag = 'smem constant byte address 0x4 - core index']
  #allocation1 [shape = 'u32[144,128]{1,0:T(1,128)}', space=vmem, size = 0x12000, scoped, tag = 'internal scratch']
  %s0 = inlined_call_operand.hbm [shape: f32[1,640], index: 0, kind: input, shape index: {}]
  %s1 = inlined_call_operand.hbm [shape: f32[1,640], index: 1, kind: input, shape index: {}]
  %s2 = inlined_call_operand.vmem [shape: f32[1,640], index: 2, kind: input, shape index: {}]
  %s3 = inlined_call_operand.hbm [shape: f32[1,640], index: 3, kind: output, shape index: {}]
  %s4 = sld [smem:[#allocation0]]
  $region30: #{tpu_custom_call.1} parent=0
    _
  %s6 = ssub.s32 1, %s4
  %s7 = scalar_select 0, %s6, %s4
  $region1: #{tpu_custom_call.1} parent=0
    #allocation2 [shape = 'u8[2560]{0}', space=vmem, size = 0xc00, scoped, tag = 'input window, operand 0, single buffered']
    #allocation3 [shape = 's32[1]{0}', space=sflag, size = 0x4, scoped, tag = 'scoped memory for tpu_custom_call.1']
    #allocation4 [shape = 's32[1]{0}', space=sflag, size = 0x4, scoped, tag = 'scoped memory for tpu_custom_call.1']
    #allocation5 [shape = 'u8[2560]{0}', space=vmem, size = 0xc00, scoped, tag = 'input window, operand 1, single buffered']
    #allocation6 [shape = 's32[1]{0}', space=sflag, size = 0x4, scoped, tag = 'scoped memory for tpu_custom_call.1']
    #allocation7 [shape = 'u8[2560]{0}', space=vmem, size = 0xc00, scoped, tag = 'output window, operand 0, single buffered']
    %8 = vsyncpa [#allocation3], 0
    %9 = vsyncpa [#allocation6], 0
    %10 = vsyncpa [#allocation4], 0
    // Predicated region
    $region2: #{tpu_custom_call.1} parent=1 // pred_check
      _
    $region3: #{tpu_custom_call.1} parent=1 // pred_check_branch
      %12 = sbr.rel (0) target = $region5
    $region4: #{tpu_custom_call.1} parent=1 // pred_region
      %s14 = ssub.s32 80, 80
      %15 = vsyncadd [#allocation3], %s14
      %s17 = sshll.u32 [#allocation2], 4
      %s18 = int_to_ptr.vmem [resolvable:$true] %s17
      %20 = dma.hbm_to_vmem [thread:$0]  %s0, 80, %s18, [#allocation3]
    $region5: #{tpu_custom_call.1} parent=1 // pred_fallthru
      _
    // Predicated region
    $region6: #{tpu_custom_call.1} parent=1 // pred_check
      _
    $region7: #{tpu_custom_call.1} parent=1 // pred_check_branch
      %22 = sbr.rel (0) target = $region9
    $region8: #{tpu_custom_call.1} parent=1 // pred_region
      %s24 = ssub.s32 80, 80
      %25 = vsyncadd [#allocation6], %s24
      %s27 = sshll.u32 [#allocation5], 4
      %s28 = int_to_ptr.vmem [resolvable:$true] %s27
      %30 = dma.hbm_to_vmem [thread:$0]  %s1, 80, %s28, [#allocation6]
    $region9: #{tpu_custom_call.1} parent=1 // pred_fallthru
      _
    // Predicated region
    $region10: #{tpu_custom_call.1} parent=1 // pred_check
      _
    $region11: #{tpu_custom_call.1} parent=1 // pred_check_branch
      %32 = sbr.rel (0) target = $region13
    $region12: #{tpu_custom_call.1} parent=1 // pred_region
      _
    $region13: #{tpu_custom_call.1} parent=1 // pred_fallthru
      _
    // Predicated region
    $region14: #{tpu_custom_call.1} parent=1 // pred_check
      _
    $region15: #{tpu_custom_call.1} parent=1 // pred_check_branch
      %34 = sbr.rel (0) target = $region17
    $region16: #{tpu_custom_call.1} parent=1 // pred_region
      %35 = dma.done [#allocation3], 80
    $region17: #{tpu_custom_call.1} parent=1 // pred_fallthru
      _
    // Predicated region
    $region18: #{tpu_custom_call.1} parent=1 // pred_check
      _
    $region19: #{tpu_custom_call.1} parent=1 // pred_check_branch
      %37 = sbr.rel (0) target = $region21
    $region20: #{tpu_custom_call.1} parent=1 // pred_region
      %38 = dma.done [#allocation6], 80
    $region21: #{tpu_custom_call.1} parent=1 // pred_fallthru
      _
    %v39 = vld [vmem:[#allocation2] sm:$0x1f]
    %v40 = vld [vmem:[#allocation5] sm:$0x1f]
    %v41 = vsub.f32 %v39, %v40
    %v42 = vld [vmem:[%s2] sm:$0x1f]
    %v43 = vmul.f32 %v41, %v42
    %v44 = vlaneseq
    %vm45 = vcmp.ge.s32.totalorder %v44, 0
    %vm46 = vcmp.lt.s32.totalorder %v44, 640
    %vm47 = vmand %vm45, %vm46
    %48 = vst.msk [vmem:[#allocation7] sm:$0x1f] %vm47, %v43
    // Predicated region
    $region22: #{tpu_custom_call.1} parent=1 // pred_check
      _
    $region23: #{tpu_custom_call.1} parent=1 // pred_check_branch
      %50 = sbr.rel (0) target = $region25
    $region24: #{tpu_custom_call.1} parent=1 // pred_region
      %s52 = ssub.s32 80, 80
      %53 = vsyncadd [#allocation4], %s52
      %s55 = sshll.u32 [#allocation7], 4
      %s56 = int_to_ptr.vmem [resolvable:$true] %s55
      %58 = dma.vmem_to_hbm [thread:$0]  %s56, 80, %s3, [#allocation4]
    $region25: #{tpu_custom_call.1} parent=1 // pred_fallthru
      _
    // Predicated region
    $region26: #{tpu_custom_call.1} parent=1 // pred_check
      _
    $region27: #{tpu_custom_call.1} parent=1 // pred_check_branch
      %60 = sbr.rel (0) target = $region29
    $region28: #{tpu_custom_call.1} parent=1 // pred_region
      %61 = dma.done [#allocation4], 80
    $region29: #{tpu_custom_call.1} parent=1 // pred_fallthru
      _
    %62 = vsyncpa [#allocation3], 1
    %63 = vsyncpa [#allocation6], 1
    %64 = vsyncpa [#allocation4], 1

</llo_original>
